<compile_context>
chip_gen: v5e
topology: v5e:2x2
jax: 0.10.0
libtpu: 0.0.40
codegen_flags: <defaults>
</compile_context>

<pallas_src>
import functools

import jax
import jax.numpy as jnp
from jax.experimental import pallas as pl
from jax.experimental.pallas import tpu as pltpu

BN_EPS = 1e-5
LANE = 128


def _round_up(n, m):
    return ((n + m - 1) // m) * m


def _pick_tile(padded_dim, max_tile=1024):
    """Largest tile in {1024, 512, 256, 128} dividing the 128-multiple dim."""
    for t in (1024, 512, 256, 128):
        if t <= max_tile and padded_dim % t == 0:
            return t
    return padded_dim


def _fused_kernel(x_ref, w0_ref, g0_ref, be0_ref, w_ref, g_ref, be_ref,
                  out_ref, acc_ref):
    """One feature-tile step of BN(fc(SiLU(BN0(fc0(cls))))) — fully fused.

    Linear biases are intentionally absent: BN's per-batch mean subtraction
    cancels them exactly.
    """
    n = pl.program_id(0)

    @pl.when(n == 0)
    def _():
        acc_ref[...] = jnp.zeros_like(acc_ref)

    # ---- Stage 1: fc0 feature tile -> BN0 (train stats) -> SiLU ------------
    cls = x_ref[...].astype(jnp.bfloat16)                        # (B, D) bf16
    z = jnp.dot(cls, w0_ref[...], preferred_element_type=jnp.float32)  # (B,tn)
    mean = jnp.mean(z, axis=0, keepdims=True)
    var = jnp.mean((z - mean) ** 2, axis=0, keepdims=True)       # two-pass
    scale = g0_ref[...] * jax.lax.rsqrt(var + BN_EPS)
    h = (z - mean) * scale + be0_ref[...]
    h = h * jax.nn.sigmoid(h)                                    # SiLU (EUP)

    # ---- Stage 2 partial: this hidden tile's contribution to fc ------------
    acc_ref[...] += jnp.dot(h.astype(jnp.bfloat16), w_ref[...],
                            preferred_element_type=jnp.float32)  # (B, H_pad)

    # ---- Finalize: BN on the full fc output, lane-dense store --------------
    @pl.when(n == pl.num_programs(0) - 1)
    def _():
        z2 = acc_ref[...]
        mean2 = jnp.mean(z2, axis=0, keepdims=True)
        var2 = jnp.mean((z2 - mean2) ** 2, axis=0, keepdims=True)
        scale2 = g_ref[...] * jax.lax.rsqrt(var2 + BN_EPS)
        out_ref[...] = ((z2 - mean2) * scale2 + be_ref[...]).astype(out_ref.dtype)


def _fused_forward(cls_f32, prepared):
    """cls_f32: (B, D) float32.  Returns (B, H_pad) float32 (padded)."""
    B, D = cls_f32.shape
    w0, g0, be0 = prepared["w0"], prepared["g0"], prepared["be0"]
    w, g, be = prepared["w"], prepared["g"], prepared["be"]
    D_pad = w0.shape[1]
    H_pad = w.shape[1]

    tn = _pick_tile(D_pad)
    num_tiles = D_pad // tn

    # Streamed weight specs; deeper buffering only when there is a real stream.
    w0_spec = pl.BlockSpec((D, tn), lambda n: (0, n))
    w_spec = pl.BlockSpec((tn, H_pad), lambda n: (n, 0))
    if num_tiles >= 3:
        w0_spec = pl.BlockSpec((D, tn), lambda n: (0, n),
                               pipeline_mode=pl.Buffered(3))
        w_spec = pl.BlockSpec((tn, H_pad), lambda n: (n, 0),
                              pipeline_mode=pl.Buffered(3))

    flops = 2 * B * D * D_pad + 2 * B * D_pad * H_pad
    bytes_accessed = (B * D * 4 + D * D_pad * 2 + D_pad * H_pad * 2
                      + 2 * D_pad * 4 + 2 * H_pad * 4 + B * H_pad * 4)

    # Actual VMEM need (streamed weights x up-to-3 buffers, rest x2, + acc),
    # plus headroom — well below v7x's 64 MiB physical for typical CLS heads.
    vmem_need = (3 * (D * tn + tn * H_pad) * 2
                 + 2 * (B * D * 4 + 2 * tn * 4 + 2 * H_pad * 4 + B * H_pad * 4)
                 + B * H_pad * 4)
    vmem_limit = int(min(100 * 1024 * 1024,
                         max(vmem_need + 6 * 1024 * 1024, 12 * 1024 * 1024)))

    return pl.pallas_call(
        _fused_kernel,
        out_shape=jax.ShapeDtypeStruct((B, H_pad), jnp.float32),
        grid_spec=pltpu.PrefetchScalarGridSpec(
            num_scalar_prefetch=0,
            grid=(num_tiles,),
            in_specs=[
                pl.BlockSpec((B, D), lambda n: (0, 0)),       # cls (resident)
                w0_spec,                                      # fc0 weights
                pl.BlockSpec((1, tn), lambda n: (0, n)),      # gamma0
                pl.BlockSpec((1, tn), lambda n: (0, n)),      # beta0
                w_spec,                                       # fc weights
                pl.BlockSpec((1, H_pad), lambda n: (0, 0)),   # gamma (resident)
                pl.BlockSpec((1, H_pad), lambda n: (0, 0)),   # beta  (resident)
            ],
            out_specs=pl.BlockSpec((B, H_pad), lambda n: (0, 0)),
            scratch_shapes=[pltpu.VMEM((B, H_pad), jnp.float32)],
        ),
        compiler_params=pltpu.CompilerParams(
            # Single axis carries the stage-2 accumulator -> "arbitrary".
            dimension_semantics=("arbitrary",),
            vmem_limit_bytes=vmem_limit,
        ),
        cost_estimate=pl.CostEstimate(
            flops=int(flops),
            transcendentals=int(B * D_pad),
            bytes_accessed=int(bytes_accessed),
        ),
    )(cls_f32, w0, g0, be0, w, g, be)


def cls_backend_2fc(x, prepared):
    """x: (B, T, D) float32.  Returns (B, hidden_dim) float32."""
    assert x.ndim == 3, f"Input size error. Need 3, but get {x.ndim}"
    # The only wrapper-side op: CLS token slice.  Cast/padding live in-kernel /
    # in the one-time prepared weights.
    cls = x[:, 0, :]
    out = _fused_forward(cls, prepared)
    return out[:, :prepared["hidden_dim"]]


def init_params(key, in_dim, hidden_dim):
    """PyTorch-faithful parameter set (unpadded, f32, weights stored (in,out))."""
    k0, k1, k2, k3 = jax.random.split(key, 4)
    s = 1.0 / jnp.sqrt(in_dim)
    return {
        "w0": jax.random.uniform(k0, (in_dim, in_dim), jnp.float32, -s, s),
        "b0": jax.random.uniform(k1, (in_dim,), jnp.float32, -s, s),
        "g0": jnp.ones((in_dim,), jnp.float32),
        "be0": jnp.zeros((in_dim,), jnp.float32),
        "w": jax.random.uniform(k2, (in_dim, hidden_dim), jnp.float32, -s, s),
        "b": jax.random.uniform(k3, (hidden_dim,), jnp.float32, -s, s),
        "g": jnp.ones((hidden_dim,), jnp.float32),
        "be": jnp.zeros((hidden_dim,), jnp.float32),
    }


def prepare_params(params, in_dim, hidden_dim):
    """One-time kernel-friendly layout: pad feature dims to 128-multiples, bf16.

    Linear biases b0/b are dropped (cancelled exactly by the following BN's
    mean subtraction).  Padded gamma/beta are zero, so padded features emit 0
    (they are sliced off outside the kernel).  Only output/feature dims are
    padded; the contraction dim of fc0 stays at in_dim (MXU pads internally).
    """
    d_pad = _round_up(in_dim, LANE)
    h_pad = _round_up(hidden_dim, LANE)

    def pad_vec(v, cols):
        return jnp.pad(v.reshape(1, -1),
                       ((0, 0), (0, cols - v.shape[-1]))).astype(jnp.float32)

    w0 = jnp.pad(params["w0"],
                 ((0, 0), (0, d_pad - in_dim))).astype(jnp.bfloat16)      # (D, D_pad)
    w = jnp.pad(params["w"],
                ((0, d_pad - in_dim), (0, h_pad - hidden_dim))
                ).astype(jnp.bfloat16)                                    # (D_pad, H_pad)
    return {
        "w0": w0,
        "g0": pad_vec(params["g0"], d_pad),
        "be0": pad_vec(params["be0"], d_pad),
        "w": w,
        "g": pad_vec(params["g"], h_pad),
        "be": pad_vec(params["be"], h_pad),
        "hidden_dim": hidden_dim,
    }


def _reference(x, params):
    """Pure-JAX reference (biases included; bf16 MXU operands like the kernel)."""
    cls = x[:, 0, :]
    h = jnp.dot(cls.astype(jnp.bfloat16), params["w0"].astype(jnp.bfloat16),
                preferred_element_type=jnp.float32) + params["b0"]
    mean = h.mean(0, keepdims=True)
    var = ((h - mean) ** 2).mean(0, keepdims=True)
    h = (h - mean) * jax.lax.rsqrt(var + BN_EPS) * params["g0"] + params["be0"]
    h = h * jax.nn.sigmoid(h)
    z = jnp.dot(h.astype(jnp.bfloat16), params["w"].astype(jnp.bfloat16),
                preferred_element_type=jnp.float32) + params["b"]
    mean = z.mean(0, keepdims=True)
    var = ((z - mean) ** 2).mean(0, keepdims=True)
    return (z - mean) * jax.lax.rsqrt(var + BN_EPS) * params["g"] + params["be"]


if __name__ == "__main__":
    B, T, IN_DIM, HIDDEN_DIM = 2, 8, 32, 16

    key = jax.random.PRNGKey(0)
    kx, kp = jax.random.split(key)
    x = jax.random.normal(kx, (B, T, IN_DIM), jnp.float32)
    params = init_params(kp, IN_DIM, HIDDEN_DIM)
    prepared = prepare_params(params, IN_DIM, HIDDEN_DIM)

    out = cls_backend_2fc(x, prepared)
    jax.block_until_ready(out)
    assert out.shape == (B, HIDDEN_DIM)

    ref = _reference(x, params)
    assert bool(jnp.all(jnp.isfinite(out))), "non-finite output"
    assert bool(jnp.allclose(out, ref, atol=5e-2, rtol=5e-2)), (
        f"mismatch vs reference: max abs err {float(jnp.max(jnp.abs(out - ref)))}")
    print("KERNEL_OK")
</pallas_src>

<mosaic_0001>
module attributes {stable_mosaic.version = 11 : i64} {
  func.func @_fused_kernel(%arg0: i32, %arg1: memref<2x32xf32, #tpu.memory_space<vmem>>, %arg2: memref<32x128xbf16, #tpu.memory_space<vmem>>, %arg3: memref<1x128xf32, #tpu.memory_space<vmem>>, %arg4: memref<1x128xf32, #tpu.memory_space<vmem>>, %arg5: memref<128x128xbf16, #tpu.memory_space<vmem>>, %arg6: memref<1x128xf32, #tpu.memory_space<vmem>>, %arg7: memref<1x128xf32, #tpu.memory_space<vmem>>, %arg8: memref<2x128xf32, #tpu.memory_space<vmem>>, %arg9: memref<2x128xf32, #tpu.memory_space<vmem>>) attributes {dimension_semantics = [#tpu.dimension_semantics<arbitrary>], iteration_bounds = array<i64: 1>, scalar_prefetch = 0 : i64, scratch_operands = 1 : i64, tpu.core_type = #tpu.core_type<tc>, window_params = [{pipeline_mode = #tpu.pipeline_mode<synchronous>, transform_indices = @transform_0, window_bounds = array<i64: 2, 32>}, {transform_indices = @transform_1, window_bounds = array<i64: 32, 128>}, {transform_indices = @transform_2, window_bounds = array<i64: 1, 128>}, {transform_indices = @transform_3, window_bounds = array<i64: 1, 128>}, {transform_indices = @transform_4, window_bounds = array<i64: 128, 128>}, {pipeline_mode = #tpu.pipeline_mode<synchronous>, transform_indices = @transform_5, window_bounds = array<i64: 1, 128>}, {pipeline_mode = #tpu.pipeline_mode<synchronous>, transform_indices = @transform_6, window_bounds = array<i64: 1, 128>}, {pipeline_mode = #tpu.pipeline_mode<synchronous>, transform_indices = @transform_7, window_bounds = array<i64: 2, 128>}]} {
    %c0_i32 = arith.constant 0 : i32
    %0 = arith.cmpi eq, %arg0, %c0_i32 : i32
    %1 = arith.extui %0 : i1 to i32
    %c0_i32_0 = arith.constant 0 : i32
    %2 = arith.cmpi ne, %1, %c0_i32_0 : i32
    scf.if %2 {
      %cst_23 = arith.constant 0.000000e+00 : f32
      %45 = vector.broadcast %cst_23 : f32 to vector<2x128xf32>
      %c0_24 = arith.constant 0 : index
      %c0_25 = arith.constant 0 : index
      %46 = vector.load %arg9[%c0_24, %c0_25] : memref<2x128xf32, #tpu.memory_space<vmem>>, vector<2x128xf32>
      tpu.vector_store %arg9[%c0_24, %c0_25], %45 {strides = array<i32>} : memref<2x128xf32, #tpu.memory_space<vmem>>, vector<2x128xf32>,
    } else {
    }
    %c0 = arith.constant 0 : index
    %c0_1 = arith.constant 0 : index
    %3 = vector.load %arg1[%c0, %c0_1] : memref<2x32xf32, #tpu.memory_space<vmem>>, vector<2x32xf32>
    %4 = arith.truncf %3 : vector<2x32xf32> to vector<2x32xbf16>
    %c0_2 = arith.constant 0 : index
    %c0_3 = arith.constant 0 : index
    %5 = vector.load %arg2[%c0_2, %c0_3] : memref<32x128xbf16, #tpu.memory_space<vmem>>, vector<32x128xbf16>
    %cst = arith.constant dense<0.000000e+00> : vector<2x128xf32>
    %6 = tpu.matmul %4, %5, %cst {dimension_numbers = #tpu.dot_dimension_numbers<[1], [0], [0], [1], [0, 0, 1, 1], [], []>} : vector<2x32xbf16>, vector<32x128xbf16>, vector<2x128xf32> -> vector<2x128xf32>
    %cst_4 = arith.constant dense<0.000000e+00> : vector<128xf32>
    %7 = vector.multi_reduction <add>, %6, %cst_4 [0] : vector<2x128xf32> to vector<128xf32>
    %8 = vector.shape_cast %7 : vector<128xf32> to vector<1x128xf32>
    %cst_5 = arith.constant 2.000000e+00 : f32
    %9 = vector.broadcast %cst_5 : f32 to vector<1x128xf32>
    %10 = arith.divf %8, %9 : vector<1x128xf32>
    %11 = vector.broadcast %10 : vector<1x128xf32> to vector<2x128xf32>
    %12 = arith.subf %6, %11 : vector<2x128xf32>
    %13 = arith.mulf %12, %12 : vector<2x128xf32>
    %cst_6 = arith.constant dense<0.000000e+00> : vector<128xf32>
    %14 = vector.multi_reduction <add>, %13, %cst_6 [0] : vector<2x128xf32> to vector<128xf32>
    %15 = vector.shape_cast %14 : vector<128xf32> to vector<1x128xf32>
    %cst_7 = arith.constant 2.000000e+00 : f32
    %16 = vector.broadcast %cst_7 : f32 to vector<1x128xf32>
    %17 = arith.divf %15, %16 : vector<1x128xf32>
    %c0_8 = arith.constant 0 : index
    %c0_9 = arith.constant 0 : index
    %18 = vector.load %arg3[%c0_8, %c0_9] : memref<1x128xf32, #tpu.memory_space<vmem>>, vector<1x128xf32>
    %cst_10 = arith.constant 9.99999974E-6 : f32
    %19 = vector.broadcast %cst_10 : f32 to vector<1x128xf32>
    %20 = arith.addf %17, %19 : vector<1x128xf32>
    %21 = math.rsqrt %20 : vector<1x128xf32>
    %22 = arith.mulf %18, %21 : vector<1x128xf32>
    %23 = vector.broadcast %10 : vector<1x128xf32> to vector<2x128xf32>
    %24 = arith.subf %6, %23 : vector<2x128xf32>
    %25 = vector.broadcast %22 : vector<1x128xf32> to vector<2x128xf32>
    %26 = arith.mulf %24, %25 : vector<2x128xf32>
    %c0_11 = arith.constant 0 : index
    %c0_12 = arith.constant 0 : index
    %27 = vector.load %arg4[%c0_11, %c0_12] : memref<1x128xf32, #tpu.memory_space<vmem>>, vector<1x128xf32>
    %28 = vector.broadcast %27 : vector<1x128xf32> to vector<2x128xf32>
    %29 = arith.addf %26, %28 : vector<2x128xf32>
    %30 = arith.negf %29 : vector<2x128xf32>
    %31 = math.exp %30 : vector<2x128xf32>
    %cst_13 = arith.constant 1.000000e+00 : f32
    %32 = vector.broadcast %cst_13 : f32 to vector<2x128xf32>
    %33 = arith.addf %32, %31 : vector<2x128xf32>
    %34 = arith.divf %32, %33 : vector<2x128xf32>
    %35 = arith.mulf %29, %34 : vector<2x128xf32>
    %c0_14 = arith.constant 0 : index
    %c0_15 = arith.constant 0 : index
    %36 = vector.load %arg9[%c0_14, %c0_15] : memref<2x128xf32, #tpu.memory_space<vmem>>, vector<2x128xf32>
    %37 = arith.truncf %35 : vector<2x128xf32> to vector<2x128xbf16>
    %c0_16 = arith.constant 0 : index
    %c0_17 = arith.constant 0 : index
    %38 = vector.load %arg5[%c0_16, %c0_17] : memref<128x128xbf16, #tpu.memory_space<vmem>>, vector<128x128xbf16>
    %cst_18 = arith.constant dense<0.000000e+00> : vector<2x128xf32>
    %39 = tpu.matmul %37, %38, %cst_18 {dimension_numbers = #tpu.dot_dimension_numbers<[1], [0], [0], [1], [0, 0, 1, 1], [], []>} : vector<2x128xbf16>, vector<128x128xbf16>, vector<2x128xf32> -> vector<2x128xf32>
    %40 = arith.addf %36, %39 : vector<2x128xf32>
    %c0_19 = arith.constant 0 : index
    %c0_20 = arith.constant 0 : index
    %41 = vector.load %arg9[%c0_19, %c0_20] : memref<2x128xf32, #tpu.memory_space<vmem>>, vector<2x128xf32>
    tpu.vector_store %arg9[%c0_19, %c0_20], %40 {strides = array<i32>} : memref<2x128xf32, #tpu.memory_space<vmem>>, vector<2x128xf32>,
    %c0_i32_21 = arith.constant 0 : i32
    %42 = arith.cmpi eq, %arg0, %c0_i32_21 : i32
    %43 = arith.extui %42 : i1 to i32
    %c0_i32_22 = arith.constant 0 : i32
    %44 = arith.cmpi ne, %43, %c0_i32_22 : i32
    scf.if %44 {
      %c0_23 = arith.constant 0 : index
      %c0_24 = arith.constant 0 : index
      %45 = vector.load %arg9[%c0_23, %c0_24] : memref<2x128xf32, #tpu.memory_space<vmem>>, vector<2x128xf32>
      %cst_25 = arith.constant dense<0.000000e+00> : vector<128xf32>
      %46 = vector.multi_reduction <add>, %45, %cst_25 [0] : vector<2x128xf32> to vector<128xf32>
      %47 = vector.shape_cast %46 : vector<128xf32> to vector<1x128xf32>
      %cst_26 = arith.constant 2.000000e+00 : f32
      %48 = vector.broadcast %cst_26 : f32 to vector<1x128xf32>
      %49 = arith.divf %47, %48 : vector<1x128xf32>
      %50 = vector.broadcast %49 : vector<1x128xf32> to vector<2x128xf32>
      %51 = arith.subf %45, %50 : vector<2x128xf32>
      %52 = arith.mulf %51, %51 : vector<2x128xf32>
      %cst_27 = arith.constant dense<0.000000e+00> : vector<128xf32>
      %53 = vector.multi_reduction <add>, %52, %cst_27 [0] : vector<2x128xf32> to vector<128xf32>
      %54 = vector.shape_cast %53 : vector<128xf32> to vector<1x128xf32>
      %cst_28 = arith.constant 2.000000e+00 : f32
      %55 = vector.broadcast %cst_28 : f32 to vector<1x128xf32>
      %56 = arith.divf %54, %55 : vector<1x128xf32>
      %c0_29 = arith.constant 0 : index
      %c0_30 = arith.constant 0 : index
      %57 = vector.load %arg6[%c0_29, %c0_30] : memref<1x128xf32, #tpu.memory_space<vmem>>, vector<1x128xf32>
      %cst_31 = arith.constant 9.99999974E-6 : f32
      %58 = vector.broadcast %cst_31 : f32 to vector<1x128xf32>
      %59 = arith.addf %56, %58 : vector<1x128xf32>
      %60 = math.rsqrt %59 : vector<1x128xf32>
      %61 = arith.mulf %57, %60 : vector<1x128xf32>
      %62 = vector.broadcast %49 : vector<1x128xf32> to vector<2x128xf32>
      %63 = arith.subf %45, %62 : vector<2x128xf32>
      %64 = vector.broadcast %61 : vector<1x128xf32> to vector<2x128xf32>
      %65 = arith.mulf %63, %64 : vector<2x128xf32>
      %c0_32 = arith.constant 0 : index
      %c0_33 = arith.constant 0 : index
      %66 = vector.load %arg7[%c0_32, %c0_33] : memref<1x128xf32, #tpu.memory_space<vmem>>, vector<1x128xf32>
      %67 = vector.broadcast %66 : vector<1x128xf32> to vector<2x128xf32>
      %68 = arith.addf %65, %67 : vector<2x128xf32>
      %c0_34 = arith.constant 0 : index
      %c0_35 = arith.constant 0 : index
      %69 = vector.load %arg8[%c0_34, %c0_35] : memref<2x128xf32, #tpu.memory_space<vmem>>, vector<2x128xf32>
      tpu.vector_store %arg8[%c0_34, %c0_35], %68 {strides = array<i32>} : memref<2x128xf32, #tpu.memory_space<vmem>>, vector<2x128xf32>,
    } else {
    }
    return
  }
  func.func @transform_0(%arg0: i32) -> (i32, i32) {
    %c0_i32 = arith.constant 0 : i32
    %c0_i32_0 = arith.constant 0 : i32
    %c0_i32_1 = arith.constant 0 : i32
    return %c0_i32, %c0_i32_0 : i32, i32
  }
  func.func @transform_1(%arg0: i32) -> (i32, i32) {
    %c0_i32 = arith.constant 0 : i32
    %c0_i32_0 = arith.constant 0 : i32
    return %c0_i32, %arg0 : i32, i32
  }
  func.func @transform_2(%arg0: i32) -> (i32, i32) {
    %c0_i32 = arith.constant 0 : i32
    %c0_i32_0 = arith.constant 0 : i32
    return %c0_i32, %arg0 : i32, i32
  }
  func.func @transform_3(%arg0: i32) -> (i32, i32) {
    %c0_i32 = arith.constant 0 : i32
    %c0_i32_0 = arith.constant 0 : i32
    return %c0_i32, %arg0 : i32, i32
  }
  func.func @transform_4(%arg0: i32) -> (i32, i32) {
    %c0_i32 = arith.constant 0 : i32
    %c0_i32_0 = arith.constant 0 : i32
    return %arg0, %c0_i32 : i32, i32
  }
  func.func @transform_5(%arg0: i32) -> (i32, i32) {
    %c0_i32 = arith.constant 0 : i32
    %c0_i32_0 = arith.constant 0 : i32
    %c0_i32_1 = arith.constant 0 : i32
    return %c0_i32, %c0_i32_0 : i32, i32
  }
  func.func @transform_6(%arg0: i32) -> (i32, i32) {
    %c0_i32 = arith.constant 0 : i32
    %c0_i32_0 = arith.constant 0 : i32
    %c0_i32_1 = arith.constant 0 : i32
    return %c0_i32, %c0_i32_0 : i32, i32
  }
  func.func @transform_7(%arg0: i32) -> (i32, i32) {
    %c0_i32 = arith.constant 0 : i32
    %c0_i32_0 = arith.constant 0 : i32
    %c0_i32_1 = arith.constant 0 : i32
    return %c0_i32, %c0_i32_0 : i32, i32
  }
}

</mosaic_0001>

<llo_original>
// kernel: tpu_custom_call.1
$region0: #{tpu_custom_call.1}
  #allocation0 [shape = 'u32[]', space=smem, size = 0x4, offset = 0x4, fixed_abs, tag = 'smem constant byte address 0x4 - core index']
  #allocation1 [shape = 'u32[72,128]{1,0:T(1,128)}', space=vmem, size = 0x9000, scoped, tag = 'internal scratch']
  #allocation2 [shape = 'f32[2,128]{1,0:T(2,128)}', space=vmem, size = 0x400, scoped, tag = 'scratch operand']
  %s0 = inlined_call_operand.hbm [shape: f32[2,32], index: 0, kind: input, shape index: {}]
  %s1 = inlined_call_operand.hbm [shape: bf16[32,128], index: 1, kind: input, shape index: {}]
  %s2 = inlined_call_operand.vmem [shape: f32[1,128], index: 2, kind: input, shape index: {}]
  %s3 = inlined_call_operand.vmem [shape: f32[1,128], index: 3, kind: input, shape index: {}]
  %s4 = inlined_call_operand.hbm [shape: bf16[128,128], index: 4, kind: input, shape index: {}]
  %s5 = inlined_call_operand.vmem [shape: f32[1,128], index: 5, kind: input, shape index: {}]
  %s6 = inlined_call_operand.vmem [shape: f32[1,128], index: 6, kind: input, shape index: {}]
  %s7 = inlined_call_operand.hbm [shape: f32[2,128], index: 7, kind: output, shape index: {}]
  %s8 = sld [smem:[#allocation0]]
  $region58: #{tpu_custom_call.1} parent=0
    _
  %s10 = ssub.s32 1, %s8
  %s11 = scalar_select 0, %s10, %s8
  $region1: #{tpu_custom_call.1} parent=0
    #allocation3 [shape = 'u8[1024]{0}', space=vmem, size = 0x400, scoped, tag = 'input window, operand 0, single buffered']
    #allocation4 [shape = 's32[1]{0}', space=sflag, size = 0x4, scoped, tag = 'scoped memory for tpu_custom_call.1']
    #allocation5 [shape = 's32[1]{0}', space=sflag, size = 0x4, scoped, tag = 'scoped memory for tpu_custom_call.1']
    #allocation6 [shape = 'u8[8192]{0}', space=vmem, size = 0x2000, scoped, tag = 'input window, operand 1, single buffered']
    #allocation7 [shape = 's32[1]{0}', space=sflag, size = 0x4, scoped, tag = 'scoped memory for tpu_custom_call.1']
    #allocation8 [shape = 'u8[32768]{0}', space=vmem, size = 0x8000, scoped, tag = 'input window, operand 4, single buffered']
    #allocation9 [shape = 'u8[1024]{0}', space=vmem, size = 0x400, scoped, tag = 'output window, operand 0, single buffered']
    %12 = vsyncpa [#allocation4], 0
    %13 = vsyncpa [#allocation7], 0
    %14 = vsyncpa [#allocation5], 0
    // Predicated region
    $region2: #{tpu_custom_call.1} parent=1 // pred_check
      _
    $region3: #{tpu_custom_call.1} parent=1 // pred_check_branch
      %16 = sbr.rel (0) target = $region5
    $region4: #{tpu_custom_call.1} parent=1 // pred_region
      %18 = vsyncadd [#allocation4], 0
      %s20 = sshll.u32 %s0, 4
      %s21 = int_to_ptr.hbm [resolvable:$true] %s20
      %s22 = sshll.u32 [#allocation3], 4
      %s23 = int_to_ptr.vmem [resolvable:$true] %s22
      %25 = dma.hbm_to_vmem [thread:$0]  %s21, 32, %s23, [#allocation4]
    $region5: #{tpu_custom_call.1} parent=1 // pred_fallthru
      _
    // Predicated region
    $region6: #{tpu_custom_call.1} parent=1 // pred_check
      _
    $region7: #{tpu_custom_call.1} parent=1 // pred_check_branch
      %27 = sbr.rel (0) target = $region9
    $region8: #{tpu_custom_call.1} parent=1 // pred_region
      %29 = vsyncadd [#allocation7], 0
      %s30 = sshll.u32 %s1, 4
      %s31 = int_to_ptr.hbm [resolvable:$true] %s30
      %s32 = sshll.u32 [#allocation6], 4
      %s33 = int_to_ptr.vmem [resolvable:$true] %s32
      %38 = dma.hbm_to_vmem [thread:$0]  %s31, 256, %s33, [#allocation7], 64, 64, 4
    $region9: #{tpu_custom_call.1} parent=1 // pred_fallthru
      _
    // Predicated region
    $region10: #{tpu_custom_call.1} parent=1 // pred_check
      _
    $region11: #{tpu_custom_call.1} parent=1 // pred_check_branch
      %40 = sbr.rel (0) target = $region13
    $region12: #{tpu_custom_call.1} parent=1 // pred_region
      _
    $region13: #{tpu_custom_call.1} parent=1 // pred_fallthru
      _
    // Predicated region
    $region14: #{tpu_custom_call.1} parent=1 // pred_check
      _
    $region15: #{tpu_custom_call.1} parent=1 // pred_check_branch
      %42 = sbr.rel (0) target = $region17
    $region16: #{tpu_custom_call.1} parent=1 // pred_region
      _
    $region17: #{tpu_custom_call.1} parent=1 // pred_fallthru
      _
    // Predicated region
    $region18: #{tpu_custom_call.1} parent=1 // pred_check
      _
    $region19: #{tpu_custom_call.1} parent=1 // pred_check_branch
      %44 = sbr.rel (0) target = $region21
    $region20: #{tpu_custom_call.1} parent=1 // pred_region
      %46 = vsyncadd [#allocation7], 0
      %s47 = sshll.u32 %s4, 4
      %s48 = int_to_ptr.hbm [resolvable:$true] %s47
      %s49 = sshll.u32 [#allocation8], 4
      %s50 = int_to_ptr.vmem [resolvable:$true] %s49
      %55 = dma.hbm_to_vmem [thread:$0]  %s48, 1024, %s50, [#allocation7], 64, 64, 4
    $region21: #{tpu_custom_call.1} parent=1 // pred_fallthru
      _
    // Predicated region
    $region22: #{tpu_custom_call.1} parent=1 // pred_check
      _
    $region23: #{tpu_custom_call.1} parent=1 // pred_check_branch
      %57 = sbr.rel (0) target = $region25
    $region24: #{tpu_custom_call.1} parent=1 // pred_region
      _
    $region25: #{tpu_custom_call.1} parent=1 // pred_fallthru
      _
    // Predicated region
    $region26: #{tpu_custom_call.1} parent=1 // pred_check
      _
    $region27: #{tpu_custom_call.1} parent=1 // pred_check_branch
      %59 = sbr.rel (0) target = $region29
    $region28: #{tpu_custom_call.1} parent=1 // pred_region
      _
    $region29: #{tpu_custom_call.1} parent=1 // pred_fallthru
      _
    // Predicated region
    $region30: #{tpu_custom_call.1} parent=1 // pred_check
      _
    $region31: #{tpu_custom_call.1} parent=1 // pred_check_branch
      %61 = sbr.rel (0) target = $region33
    $region32: #{tpu_custom_call.1} parent=1 // pred_region
      %63 = dma.done [#allocation4], 32
    $region33: #{tpu_custom_call.1} parent=1 // pred_fallthru
      _
    // Predicated region
    $region34: #{tpu_custom_call.1} parent=1 // pred_check
      _
    $region35: #{tpu_custom_call.1} parent=1 // pred_check_branch
      %65 = sbr.rel (0) target = $region37
    $region36: #{tpu_custom_call.1} parent=1 // pred_region
      %67 = dma.done [#allocation7], 256
    $region37: #{tpu_custom_call.1} parent=1 // pred_fallthru
      _
    // Predicated region
    $region38: #{tpu_custom_call.1} parent=1 // pred_check
      _
    $region39: #{tpu_custom_call.1} parent=1 // pred_check_branch
      %69 = sbr.rel (0) target = $region41
    $region40: #{tpu_custom_call.1} parent=1 // pred_region
      %71 = dma.done [#allocation7], 1024
    $region41: #{tpu_custom_call.1} parent=1 // pred_fallthru
      _
    %p73 = scmp.eq.s32.totalorder 0, 0
    // Predicated region
    $region42: #{tpu_custom_call.1} parent=1 // pred_check
      %p74 = pneg %p73
    $region43: #{tpu_custom_call.1} parent=1 // pred_check_branch
      %76 = sbr.rel (%p74) target = $region45
    $region44: #{tpu_custom_call.1} parent=1 // pred_region
      %77 = vst [vmem:[#allocation2] sm:$0x3] 0.0
    $region45: #{tpu_custom_call.1} parent=1 // pred_fallthru
      _
    %v78 = vld [vmem:[#allocation3] sm:$0x3]
    %v79 = vpack.c.bf16 %v78, %v78
    %v80 = vld [vmem:[#allocation6] sm:$0xf]
    %v81 = vld [vmem:[#allocation6 + $0x4] sm:$0xf]
    %v82 = vld [vmem:[#allocation6 + $0x8] sm:$0xf]
    %v83 = vld [vmem:[#allocation6 + $0xc] sm:$0xf]
    %v88 = vunpack.c.l.b16 %v80
    %v89 = vunpack.c.l.b16 %v81
    %v90 = vunpack.c.l.b16 %v82
    %v91 = vunpack.c.l.b16 %v83
    %v92 = vpack.c.b16 %v89, %v88
    %v93 = vpack.c.b16 %v91, %v90
    %vm96 = vcmask 261120
    %v98 = vsel %vm96, %v79, 0
    %100 = vmatpush.bf16.msra.mxu0 0
    %101 = vmatpush.bf16.msra.mxu0 0
    %102 = vmatpush.bf16.msra.mxu0 0
    %103 = vmatpush.bf16.msra.mxu0 0
    %104 = vmatpush.bf16.msra.mxu0 0
    %105 = vmatpush.bf16.msra.mxu0 0
    %106 = vmatpush.bf16.msra.mxu0 %v93
    %107 = vmatpush.bf16.msra.mxu0 %v92
    %108 = vmatmul.bf16.gmra.mxu0 %v98
    %v109 = vpop.f32.mrf.mxu0
    %v110 = vadd.f32 0.0, %v109
    %v111 = vpop.f32.mrf.mxu0
    %112 = vdwg.mxu0
    %vm113 = vcmask 1041408
    %v114 = vsel %vm113, %v110, 0.0
    %v115 = vrot.slane %v114, 4
    %v116 = vadd.f32 %v114, %v115
    %v117 = vrot.slane %v116, 2
    %v118 = vadd.f32 %v116, %v117
    %v119 = vrot.slane %v118, 1
    %v120 = vadd.f32 %v118, %v119
    %v121 = vrcp.pop 2.0
    %v122 = vmul.f32 2.0, %v121
    %v123 = vsub.f32 1.0, %v122
    %v124 = vmul.f32 %v121, %v123
    %v125 = vadd.f32 %v121, %v124
    %vm126 = vweird.f32 %v121
    %v127 = vsel %vm126, %v121, %v125
    %v128 = vmul.f32 %v120, %v127
    %v129 = vsub.f32 %v110, %v128
    %v130 = vmul.f32 %v129, %v129
    %v131 = vsel %vm113, %v130, 0.0
    %v132 = vrot.slane %v131, 4
    %v133 = vadd.f32 %v131, %v132
    %v134 = vrot.slane %v133, 2
    %v135 = vadd.f32 %v133, %v134
    %v136 = vrot.slane %v135, 1
    %v137 = vadd.f32 %v135, %v136
    %v138 = vmul.f32 %v137, %v127
    %v139 = vld [vmem:[%s2] sm:$0x1]
    %v140 = vadd.f32 %v138, 1e-05
    %v141 = vrsqrt.pop %v140
    %v142 = vmul.f32 %v141, %v140
    %v143 = vmul.f32 %v142, %v141
    %v144 = vmul.f32 0.5, %v143
    %v145 = vsub.f32 1.5, %v144
    %v146 = vmul.f32 %v141, %v145
    %vm147 = vweird.f32 %v140
    %vm148 = vweird.f32 %v141
    %vm149 = vmor %vm147, %vm148
    %v150 = vsel %vm149, %v141, %v146
    %v151 = vmul.f32 %v139, %v150
    %v153 = vperm.slane %v151, 0
    %v155 = vmul.f32 %v129, %v153
    %v156 = vld [vmem:[%s3] sm:$0x1]
    %v158 = vperm.slane %v156, 0
    %v160 = vadd.f32 %v155, %v158
    %v161 = vxor.u32 %v160, 2147483648
    %v162 = vmul.f32 %v161, 1.442695
    %v163 = vpow.pop %v162
    %v164 = vadd.f32 %v163, 1.0
    %v165 = vrcp.pop %v164
    %v166 = vmul.f32 %v164, %v165
    %v167 = vsub.f32 1.0, %v166
    %v168 = vmul.f32 %v165, %v167
    %v169 = vadd.f32 %v165, %v168
    %vm170 = vweird.f32 %v164
    %vm171 = vweird.f32 %v165
    %vm172 = vmor %vm170, %vm171
    %v173 = vsel %vm172, %v165, %v169
    %v174 = vand.u32 2147483647, %v164
    %vm175 = vcmp.eq.f32.partialorder %v174, 8.507059e+37
    %v176 = vand.u32 %v164, 2147483648
    %v177 = vor.u32 1.1754944e-38, %v176
    %v178 = vsel %vm175, %v177, %v173
    %v179 = vmul.f32 1.0, %v178
    %v180 = vmul.f32 %v160, %v179
    %v181 = vld [vmem:[#allocation2] sm:$0x3]
    %v182 = vpack.c.bf16 %v180, %v180
    %v183 = vld [vmem:[#allocation8] sm:$0xf]
    %v184 = vld [vmem:[#allocation8 + $0x4] sm:$0xf]
    %v185 = vld [vmem:[#allocation8 + $0x8] sm:$0xf]
    %v186 = vld [vmem:[#allocation8 + $0xc] sm:$0xf]
    %v187 = vld [vmem:[#allocation8 + $0x10] sm:$0xf]
    %v188 = vld [vmem:[#allocation8 + $0x14] sm:$0xf]
    %v189 = vld [vmem:[#allocation8 + $0x18] sm:$0xf]
    %v190 = vld [vmem:[#allocation8 + $0x1c] sm:$0xf]
    %v191 = vld [vmem:[#allocation8 + $0x20] sm:$0xf]
    %v192 = vld [vmem:[#allocation8 + $0x24] sm:$0xf]
    %v193 = vld [vmem:[#allocation8 + $0x28] sm:$0xf]
    %v194 = vld [vmem:[#allocation8 + $0x2c] sm:$0xf]
    %v195 = vld [vmem:[#allocation8 + $0x30] sm:$0xf]
    %v196 = vld [vmem:[#allocation8 + $0x34] sm:$0xf]
    %v197 = vld [vmem:[#allocation8 + $0x38] sm:$0xf]
    %v198 = vld [vmem:[#allocation8 + $0x3c] sm:$0xf]
    %v215 = vunpack.c.l.b16 %v183
    %v216 = vunpack.c.l.b16 %v184
    %v217 = vunpack.c.l.b16 %v185
    %v218 = vunpack.c.l.b16 %v186
    %v219 = vunpack.c.l.b16 %v187
    %v220 = vunpack.c.l.b16 %v188
    %v221 = vunpack.c.l.b16 %v189
    %v222 = vunpack.c.l.b16 %v190
    %v223 = vunpack.c.l.b16 %v191
    %v224 = vunpack.c.l.b16 %v192
    %v225 = vunpack.c.l.b16 %v193
    %v226 = vunpack.c.l.b16 %v194
    %v227 = vunpack.c.l.b16 %v195
    %v228 = vunpack.c.l.b16 %v196
    %v229 = vunpack.c.l.b16 %v197
    %v230 = vunpack.c.l.b16 %v198
    %v231 = vpack.c.b16 %v216, %v215
    %v232 = vpack.c.b16 %v218, %v217
    %v233 = vpack.c.b16 %v220, %v219
    %v234 = vpack.c.b16 %v222, %v221
    %v235 = vpack.c.b16 %v224, %v223
    %v236 = vpack.c.b16 %v226, %v225
    %v237 = vpack.c.b16 %v228, %v227
    %v238 = vpack.c.b16 %v230, %v229
    %247 = vmatpush.bf16.msra.mxu0 %v238
    %248 = vmatpush.bf16.msra.mxu0 %v237
    %249 = vmatpush.bf16.msra.mxu0 %v236
    %250 = vmatpush.bf16.msra.mxu0 %v235
    %251 = vmatpush.bf16.msra.mxu0 %v234
    %252 = vmatpush.bf16.msra.mxu0 %v233
    %253 = vmatpush.bf16.msra.mxu0 %v232
    %254 = vmatpush.bf16.msra.mxu0 %v231
    %255 = vmatmul.bf16.gmra.mxu0 %v182
    %v256 = vpop.f32.mrf.mxu0
    %v257 = vadd.f32 0.0, %v256
    %v258 = vpop.f32.mrf.mxu0
    %259 = vdwg.mxu0
    %v260 = vadd.f32 %v181, %v257
    %261 = vst [vmem:[#allocation2] sm:$0x3] %v260
    // Predicated region
    $region46: #{tpu_custom_call.1} parent=1 // pred_check
      %p262 = pneg %p73
    $region47: #{tpu_custom_call.1} parent=1 // pred_check_branch
      %264 = sbr.rel (%p262) target = $region49
    $region48: #{tpu_custom_call.1} parent=1 // pred_region
      %v265 = vld [vmem:[#allocation2] sm:$0x3]
      %v266 = vsel %vm113, %v265, 0.0
      %v267 = vrot.slane %v266, 4
      %v268 = vadd.f32 %v266, %v267
      %v269 = vrot.slane %v268, 2
      %v270 = vadd.f32 %v268, %v269
      %v271 = vrot.slane %v270, 1
      %v272 = vadd.f32 %v270, %v271
      %v273 = vmul.f32 %v272, %v127
      %v274 = vsub.f32 %v265, %v273
      %v275 = vmul.f32 %v274, %v274
      %v276 = vsel %vm113, %v275, 0.0
      %v277 = vrot.slane %v276, 4
      %v278 = vadd.f32 %v276, %v277
      %v279 = vrot.slane %v278, 2
      %v280 = vadd.f32 %v278, %v279
      %v281 = vrot.slane %v280, 1
      %v282 = vadd.f32 %v280, %v281
      %v283 = vmul.f32 %v282, %v127
      %v284 = vld [vmem:[%s5] sm:$0x1]
      %v285 = vadd.f32 %v283, 1e-05
      %v286 = vrsqrt.pop %v285
      %v287 = vmul.f32 %v286, %v285
      %v288 = vmul.f32 %v287, %v286
      %v289 = vmul.f32 0.5, %v288
      %v290 = vsub.f32 1.5, %v289
      %v291 = vmul.f32 %v286, %v290
      %vm292 = vweird.f32 %v285
      %vm293 = vweird.f32 %v286
      %vm294 = vmor %vm292, %vm293
      %v295 = vsel %vm294, %v286, %v291
      %v296 = vmul.f32 %v284, %v295
      %v298 = vperm.slane %v296, 0
      %v300 = vmul.f32 %v274, %v298
      %v301 = vld [vmem:[%s6] sm:$0x1]
      %v303 = vperm.slane %v301, 0
      %v305 = vadd.f32 %v300, %v303
      %306 = vst [vmem:[#allocation9] sm:$0x3] %v305
    $region49: #{tpu_custom_call.1} parent=1 // pred_fallthru
      _
    // Predicated region
    $region50: #{tpu_custom_call.1} parent=1 // pred_check
      _
    $region51: #{tpu_custom_call.1} parent=1 // pred_check_branch
      %308 = sbr.rel (0) target = $region53
    $region52: #{tpu_custom_call.1} parent=1 // pred_region
      %310 = vsyncadd [#allocation5], 0
      %s312 = sshll.u32 [#allocation9], 4
      %s313 = int_to_ptr.vmem [resolvable:$true] %s312
      %s314 = sshll.u32 %s7, 4
      %s315 = int_to_ptr.hbm [resolvable:$true] %s314
      %317 = dma.vmem_to_hbm [thread:$0]  %s313, 32, %s315, [#allocation5]
    $region53: #{tpu_custom_call.1} parent=1 // pred_fallthru
      _
    // Predicated region
    $region54: #{tpu_custom_call.1} parent=1 // pred_check
      _
    $region55: #{tpu_custom_call.1} parent=1 // pred_check_branch
      %319 = sbr.rel (0) target = $region57
    $region56: #{tpu_custom_call.1} parent=1 // pred_region
      %321 = dma.done [#allocation5], 32
    $region57: #{tpu_custom_call.1} parent=1 // pred_fallthru
      _
    %322 = vsyncpa [#allocation4], 1
    %323 = vsyncpa [#allocation7], 1
    %324 = vsyncpa [#allocation5], 1

</llo_original>
